<compile_context>
chip_gen: v6e
topology: v6e:2x2x1
jax: 0.10.0
libtpu: 0.0.40
codegen_flags: <defaults>
</compile_context>

<pallas_src>
import functools

import jax
import jax.numpy as jnp
import numpy as np
from jax.experimental import pallas as pl
from jax.experimental.pallas import tpu as pltpu


def _round_up(v, m):
    return (v + m - 1) // m * m


def _spatial_attn_kernel(x_ref, wf_ref, bst_ref, vs_ref, out_ref, *,
                         bb, n_pad, n_valid, t, t_off, mxu_dtype):
    # ---- Projection stage: one fused MXU matmul covers both weight paths.
    xf = x_ref[...]                                          # (bb*N_pad, F*T)
    wf = wf_ref[...]                                         # (F*T, 2*TPAD)
    if mxu_dtype != jnp.float32:
        xf = xf.astype(mxu_dtype)
        wf = wf.astype(mxu_dtype)
    proj = jnp.dot(xf, wf, preferred_element_type=jnp.float32)  # (bb*N_pad, 2*TPAD)

    # Vreg-aligned lane slices (offsets 0 and TPAD, TPAD a multiple of 128):
    #   lhs[b,i,t'] = sum_{f,t} x[b,i,f,t] * W1[t] * W2[f,t']
    #   rhs[b,j,t ] = sum_f     x[b,j,f,t] * W3[f]
    lhs3 = proj[:, :t].reshape(bb, n_pad, t)
    rhs3 = proj[:, t_off:t_off + t].reshape(bb, n_pad, t)

    # prodT[b, k, i] = product[b, i, k] = sum_t lhs[b,i,t] * rhs[b,k,t]
    prod_t = jnp.einsum('bjt,bit->bji', rhs3, lhs3,
                        preferred_element_type=jnp.float32)  # (bb, N_pad, N_pad)

    # sigT[b, k, i] = sigmoid(product[b, i, k] + b_s[i, k])   (bst = b_s^T)
    sig_t = jax.nn.sigmoid(prod_t + bst_ref[...][None, :, :])

    vs = vs_ref[...]                                         # (N_pad, N_pad) f32

    # Per-batch (static unroll, bb is compile-time): sT[b] = V_s @ sigT[b].
    # V_s is a shared 2-D MXU LHS -> weight-stationary across the bb batches,
    # no materialized (bb, N, N) broadcast copy, matmul kept in f32 because it
    # feeds the softmax logits directly.
    for b in range(bb):
        s_b = jnp.dot(vs, sig_t[b], preferred_element_type=jnp.float32)  # (N_j, N_i)
        if n_valid < n_pad:
            lane = jax.lax.broadcasted_iota(jnp.int32, s_b.shape, 1)
            s_b = jnp.where(lane < n_valid, s_b, -jnp.inf)
        # Softmax over the original dim=1 (index i) -> the lane axis here.
        s_b = s_b - jnp.max(s_b, axis=-1, keepdims=True)
        e = jnp.exp(s_b)
        inv = pl.reciprocal(jnp.sum(e, axis=-1, keepdims=True), approx=True)
        # TODO(synk): emit a lane-dense (bb, N*N) slab instead; deferred because
        # the minor-dim-merging reshape may force a Mosaic relayout; stores are
        # N_pad (multiple of 8) lanes wide, padded from N.
        out_ref[b] = e * inv                                 # stored transposed


def _chip_profile():
    """Per-generation VMEM budget / core count for block picking."""
    kind = ""
    try:
        kind = jax.devices()[0].device_kind.lower()
    except Exception:  # pragma: no cover - defensive
        pass
    if "v7" in kind:
        # 2 TensorCores/chip, 64 MiB VMEM per TC -> keep >=2 grid steps,
        # halve the working-set budget.
        return {"cores": 2, "budget": 24 << 20, "vmem_limit": 48 << 20}
    if any(s in kind for s in ("v6", "v5e", "v5 lite", "v5lite")):
        # Single TensorCore, 128 MiB VMEM -> grid is a serial loop; take the
        # largest block that fits a generous budget.
        return {"cores": 1, "budget": 64 << 20, "vmem_limit": 96 << 20}
    # Unknown chip: stay conservative, leave the scoped-VMEM default alone.
    return {"cores": 1, "budget": 24 << 20, "vmem_limit": None}


def _step_vmem_bytes(bb, n_pad, ft, wcols):
    """Rough per-grid-step working set (f32): double-buffered I/O + live temps."""
    f32 = 4
    x_slab = 2 * bb * n_pad * ft * f32                # input block, double-buffered
    weights = 2 * (ft * wcols + 2 * n_pad * n_pad) * f32
    out_blk = 2 * bb * n_pad * n_pad * f32            # output block, double-buffered
    temps = bb * n_pad * (wcols + 6 * n_pad) * f32    # proj + prod/sig/epilogue temps
    return x_slab + weights + out_blk + temps


def _pick_batch_block(batch, n_pad, ft, wcols, prof, cap=16):
    """Largest divisor of `batch` fitting the VMEM budget and core constraints.

    `cap` bounds the statically-unrolled per-batch epilogue loop.
    """
    min_steps = min(prof["cores"], batch)
    feasible = []
    for bb in range(1, min(batch, cap) + 1):
        if batch % bb:
            continue
        if batch // bb < min_steps:
            continue
        if _step_vmem_bytes(bb, n_pad, ft, wcols) > prof["budget"]:
            continue
        feasible.append(bb)
    if not feasible:
        return 1
    balanced = [bb for bb in feasible if (batch // bb) % prof["cores"] == 0]
    return max(balanced) if balanced else max(feasible)


def spatial_attention(x, w1, w2, w3, b_s, v_s, *, batch_block=None,
                      mxu_dtype=jnp.float32):
    """x: (B, N, F, T) -> spatial attention scores (B, N, N), float32.

    At production N/T set mxu_dtype=jnp.bfloat16 on v5e/v6e/v7x: only the big
    x-slab projection matmul is narrowed (f32 accumulation kept); sigmoid,
    softmax and the V_s contraction stay float32.
    """
    B, N, F, T = x.shape
    FT = F * T
    n_pad = _round_up(N, 8)
    t_pad = max(128, _round_up(T, 128))
    wcols = 2 * t_pad

    xf32 = x.astype(jnp.float32)
    if n_pad != N:
        xf32 = jnp.pad(xf32, ((0, 0), (0, n_pad - N), (0, 0), (0, 0)))
    x2d = xf32.reshape(B * n_pad, FT)

    w1 = w1.reshape(T).astype(jnp.float32)
    w2 = w2.reshape(F, T).astype(jnp.float32)
    w3 = w3.reshape(F).astype(jnp.float32)

    # Fused projection weight, hoisted out of the kernel:
    #   cols [0, T):             M12[f*T + t, t'] = W1[t] * W2[f, t']
    #   cols [TPAD, TPAD + T):   M3 [f*T + t, t'] = W3[f] * (t == t')
    m12 = (w1[None, :, None] * w2[:, None, :]).reshape(FT, T)
    m3 = (w3[:, None, None] *
          jnp.eye(T, dtype=jnp.float32)[None, :, :]).reshape(FT, T)
    wfused = jnp.zeros((FT, wcols), jnp.float32)
    wfused = wfused.at[:, :T].set(m12).at[:, t_pad:t_pad + T].set(m3)

    bst = b_s.reshape(N, N).astype(jnp.float32).T      # bst[k, i] = b_s[i, k]
    vs = v_s.reshape(N, N).astype(jnp.float32)
    if n_pad != N:
        bst = jnp.pad(bst, ((0, n_pad - N), (0, n_pad - N)))
        vs = jnp.pad(vs, ((0, n_pad - N), (0, n_pad - N)))

    prof = _chip_profile()
    bb = (batch_block if batch_block is not None
          else _pick_batch_block(B, n_pad, FT, wcols, prof))
    assert B % bb == 0, (B, bb)
    grid = (B // bb,)

    kernel = functools.partial(_spatial_attn_kernel, bb=bb, n_pad=n_pad,
                               n_valid=N, t=T, t_off=t_pad, mxu_dtype=mxu_dtype)

    flops = (2 * B * n_pad * FT * wcols          # fused projection matmul
             + 2 * B * n_pad * n_pad * T         # product (lhs x rhs^T)
             + 2 * B * n_pad * n_pad * n_pad)    # V_s contraction
    transcendentals = 3 * B * n_pad * n_pad      # sigmoid + exp + reciprocal
    bytes_accessed = 4 * (B * n_pad * FT + FT * wcols + 2 * n_pad * n_pad
                          + B * n_pad * n_pad)

    out_t = pl.pallas_call(
        kernel,
        out_shape=jax.ShapeDtypeStruct((B, n_pad, n_pad), jnp.float32),
        grid=grid,
        in_specs=[
            pl.BlockSpec((bb * n_pad, FT), lambda g: (g, 0)),   # x slab
            pl.BlockSpec((FT, wcols), lambda g: (0, 0)),        # fused weights
            pl.BlockSpec((n_pad, n_pad), lambda g: (0, 0)),     # b_s^T
            pl.BlockSpec((n_pad, n_pad), lambda g: (0, 0)),     # V_s
        ],
        out_specs=pl.BlockSpec((bb, n_pad, n_pad), lambda g: (g, 0, 0)),
        compiler_params=pltpu.CompilerParams(
            dimension_semantics=("parallel",),
            vmem_limit_bytes=prof["vmem_limit"]),
        cost_estimate=pl.CostEstimate(
            flops=flops, transcendentals=transcendentals,
            bytes_accessed=bytes_accessed),
    )(x2d, wfused, bst, vs)

    # Kernel emitted s^T per batch (softmax ran along the lane axis); undo and
    # drop any vertex padding.
    out = jnp.swapaxes(out_t, 1, 2)
    if n_pad != N:
        out = out[:, :N, :N]
    return out


def reference(x, w1, w2, w3, b_s, v_s):
    """Pure-JAX reference mirroring the PyTorch forward (float32)."""
    lhs = jnp.einsum('bvft,t->bvf', x, w1)
    lhs = jnp.einsum('bvf,ft->bvt', lhs, w2)
    rhs = jnp.einsum('bvft,f->btv', x, w3)
    product = jnp.einsum('bvt,btw->bvw', lhs, rhs)
    sig = jax.nn.sigmoid(product + b_s)            # b_s (1, N, N) broadcasts
    s = jnp.einsum('bik,jk->bij', sig, v_s)
    s = s - jnp.max(s, axis=1, keepdims=True)
    e = jnp.exp(s)
    return e / jnp.sum(e, axis=1, keepdims=True)


if __name__ == "__main__":
    # Small shapes consistent with the module: (B, N, F, T)
    B, N, Fdim, T = 2, 8, 4, 16
    init_scale = 0.1

    key = jax.random.PRNGKey(0)
    kx, k1, k2, k3, kb, kv = jax.random.split(key, 6)

    x = jax.random.normal(kx, (B, N, Fdim, T), dtype=jnp.float32)
    W_1 = init_scale * jax.random.normal(k1, (T,), dtype=jnp.float32)
    W_2 = init_scale * jax.random.normal(k2, (Fdim, T), dtype=jnp.float32)
    W_3 = init_scale * jax.random.normal(k3, (Fdim,), dtype=jnp.float32)
    b_s = init_scale * jax.random.normal(kb, (1, N, N), dtype=jnp.float32)
    V_s = init_scale * jax.random.normal(kv, (N, N), dtype=jnp.float32)

    out = spatial_attention(x, W_1, W_2, W_3, b_s, V_s)
    out = jax.block_until_ready(out)

    ref = reference(x, W_1, W_2, W_3, b_s, V_s)
    assert out.shape == (B, N, N)
    # Tolerance accounts for f32 compute + approx (EUP) reciprocal in softmax.
    np.testing.assert_allclose(np.asarray(out), np.asarray(ref),
                               rtol=3e-3, atol=1e-3)

    print("KERNEL_OK")
</pallas_src>

<mosaic_0001>
module attributes {stable_mosaic.version = 11 : i64} {
  func.func @_spatial_attn_kernel(%arg0: i32, %arg1: memref<16x64xf32, #tpu.memory_space<vmem>>, %arg2: memref<64x256xf32, #tpu.memory_space<vmem>>, %arg3: memref<8x8xf32, #tpu.memory_space<vmem>>, %arg4: memref<8x8xf32, #tpu.memory_space<vmem>>, %arg5: memref<2x8x8xf32, #tpu.memory_space<vmem>>) attributes {dimension_semantics = [#tpu.dimension_semantics<parallel>], iteration_bounds = array<i64: 1>, scalar_prefetch = 0 : i64, scratch_operands = 0 : i64, tpu.core_type = #tpu.core_type<tc>, window_params = [{transform_indices = @transform_0, window_bounds = array<i64: 16, 64>}, {pipeline_mode = #tpu.pipeline_mode<synchronous>, transform_indices = @transform_1, window_bounds = array<i64: 64, 256>}, {pipeline_mode = #tpu.pipeline_mode<synchronous>, transform_indices = @transform_2, window_bounds = array<i64: 8, 8>}, {pipeline_mode = #tpu.pipeline_mode<synchronous>, transform_indices = @transform_3, window_bounds = array<i64: 8, 8>}, {transform_indices = @transform_4, window_bounds = array<i64: 2, 8, 8>}]} {
    %c0 = arith.constant 0 : index
    %c0_0 = arith.constant 0 : index
    %0 = vector.load %arg1[%c0, %c0_0] : memref<16x64xf32, #tpu.memory_space<vmem>>, vector<16x64xf32>
    %c0_1 = arith.constant 0 : index
    %c0_2 = arith.constant 0 : index
    %1 = vector.load %arg2[%c0_1, %c0_2] : memref<64x256xf32, #tpu.memory_space<vmem>>, vector<64x256xf32>
    %cst = arith.constant dense<0.000000e+00> : vector<16x256xf32>
    %2 = tpu.matmul %0, %1, %cst {dimension_numbers = #tpu.dot_dimension_numbers<[1], [0], [0], [1], [0, 0, 1, 1], [], []>} : vector<16x64xf32>, vector<64x256xf32>, vector<16x256xf32> -> vector<16x256xf32>
    %3 = vector.extract_strided_slice %2 {offsets = [0, 0], sizes = [16, 16], strides = [1, 1]} : vector<16x256xf32> to vector<16x16xf32>
    %4 = vector.shape_cast %3 : vector<16x16xf32> to vector<2x8x16xf32>
    %5 = vector.extract_strided_slice %2 {offsets = [0, 128], sizes = [16, 16], strides = [1, 1]} : vector<16x256xf32> to vector<16x16xf32>
    %6 = vector.shape_cast %5 : vector<16x16xf32> to vector<2x8x16xf32>
    "tpu.trace_start"() <{level = 10 : i32, message = "bjt,bit->bji"}> : () -> ()
    %cst_3 = arith.constant dense<0.000000e+00> : vector<2x8x8xf32>
    %7 = tpu.matmul %6, %4, %cst_3 {dimension_numbers = #tpu.dot_dimension_numbers<[2], [2], [1], [1], [0, 0, 0, 1, 1, 1], [0], [0]>} : vector<2x8x16xf32>, vector<2x8x16xf32>, vector<2x8x8xf32> -> vector<2x8x8xf32>
    "tpu.trace_stop"() : () -> ()
    %c0_4 = arith.constant 0 : index
    %c0_5 = arith.constant 0 : index
    %8 = vector.load %arg3[%c0_4, %c0_5] : memref<8x8xf32, #tpu.memory_space<vmem>>, vector<8x8xf32>
    %9 = vector.shape_cast %8 : vector<8x8xf32> to vector<1x8x8xf32>
    %10 = vector.broadcast %9 : vector<1x8x8xf32> to vector<2x8x8xf32>
    %11 = arith.addf %7, %10 : vector<2x8x8xf32>
    %12 = arith.negf %11 : vector<2x8x8xf32>
    %13 = math.exp %12 : vector<2x8x8xf32>
    %cst_6 = arith.constant 1.000000e+00 : f32
    %14 = vector.broadcast %cst_6 : f32 to vector<2x8x8xf32>
    %15 = arith.addf %14, %13 : vector<2x8x8xf32>
    %16 = arith.divf %14, %15 : vector<2x8x8xf32>
    %c0_7 = arith.constant 0 : index
    %c0_8 = arith.constant 0 : index
    %17 = vector.load %arg4[%c0_7, %c0_8] : memref<8x8xf32, #tpu.memory_space<vmem>>, vector<8x8xf32>
    %18 = vector.extract_strided_slice %16 {offsets = [0, 0, 0], sizes = [1, 8, 8], strides = [1, 1, 1]} : vector<2x8x8xf32> to vector<1x8x8xf32>
    %19 = vector.shape_cast %18 : vector<1x8x8xf32> to vector<8x8xf32>
    %cst_9 = arith.constant dense<0.000000e+00> : vector<8x8xf32>
    %20 = tpu.matmul %17, %19, %cst_9 {dimension_numbers = #tpu.dot_dimension_numbers<[1], [0], [0], [1], [0, 0, 1, 1], [], []>} : vector<8x8xf32>, vector<8x8xf32>, vector<8x8xf32> -> vector<8x8xf32>
    %cst_10 = arith.constant dense<0xFF800000> : vector<8xf32>
    %21 = vector.multi_reduction <maximumf>, %20, %cst_10 [1] : vector<8x8xf32> to vector<8xf32>
    %22 = vector.shape_cast %21 : vector<8xf32> to vector<8x1xf32>
    %23 = vector.broadcast %22 : vector<8x1xf32> to vector<8x8xf32>
    %24 = arith.subf %20, %23 : vector<8x8xf32>
    %25 = math.exp %24 : vector<8x8xf32>
    %cst_11 = arith.constant dense<0.000000e+00> : vector<8xf32>
    %26 = vector.multi_reduction <add>, %25, %cst_11 [1] : vector<8x8xf32> to vector<8xf32>
    %27 = vector.shape_cast %26 : vector<8xf32> to vector<8x1xf32>
    %28 = tpu.reciprocal %27 {approx = true} : vector<8x1xf32> -> vector<8x1xf32>
    %29 = vector.broadcast %28 : vector<8x1xf32> to vector<8x8xf32>
    %30 = arith.mulf %25, %29 : vector<8x8xf32>
    %c0_12 = arith.constant 0 : index
    %c0_13 = arith.constant 0 : index
    %c0_14 = arith.constant 0 : index
    %31 = vector.load %arg5[%c0_12, %c0_13, %c0_14] : memref<2x8x8xf32, #tpu.memory_space<vmem>>, vector<1x8x8xf32>
    %32 = vector.shape_cast %31 : vector<1x8x8xf32> to vector<8x8xf32>
    %33 = vector.shape_cast %30 : vector<8x8xf32> to vector<1x8x8xf32>
    tpu.vector_store %arg5[%c0_12, %c0_13, %c0_14], %33 {strides = array<i32>} : memref<2x8x8xf32, #tpu.memory_space<vmem>>, vector<1x8x8xf32>,
    %34 = vector.extract_strided_slice %16 {offsets = [1, 0, 0], sizes = [1, 8, 8], strides = [1, 1, 1]} : vector<2x8x8xf32> to vector<1x8x8xf32>
    %35 = vector.shape_cast %34 : vector<1x8x8xf32> to vector<8x8xf32>
    %cst_15 = arith.constant dense<0.000000e+00> : vector<8x8xf32>
    %36 = tpu.matmul %17, %35, %cst_15 {dimension_numbers = #tpu.dot_dimension_numbers<[1], [0], [0], [1], [0, 0, 1, 1], [], []>} : vector<8x8xf32>, vector<8x8xf32>, vector<8x8xf32> -> vector<8x8xf32>
    %cst_16 = arith.constant dense<0xFF800000> : vector<8xf32>
    %37 = vector.multi_reduction <maximumf>, %36, %cst_16 [1] : vector<8x8xf32> to vector<8xf32>
    %38 = vector.shape_cast %37 : vector<8xf32> to vector<8x1xf32>
    %39 = vector.broadcast %38 : vector<8x1xf32> to vector<8x8xf32>
    %40 = arith.subf %36, %39 : vector<8x8xf32>
    %41 = math.exp %40 : vector<8x8xf32>
    %cst_17 = arith.constant dense<0.000000e+00> : vector<8xf32>
    %42 = vector.multi_reduction <add>, %41, %cst_17 [1] : vector<8x8xf32> to vector<8xf32>
    %43 = vector.shape_cast %42 : vector<8xf32> to vector<8x1xf32>
    %44 = tpu.reciprocal %43 {approx = true} : vector<8x1xf32> -> vector<8x1xf32>
    %45 = vector.broadcast %44 : vector<8x1xf32> to vector<8x8xf32>
    %46 = arith.mulf %41, %45 : vector<8x8xf32>
    %c1 = arith.constant 1 : index
    %c0_18 = arith.constant 0 : index
    %c0_19 = arith.constant 0 : index
    %47 = vector.load %arg5[%c1, %c0_18, %c0_19] : memref<2x8x8xf32, #tpu.memory_space<vmem>>, vector<1x8x8xf32>
    %48 = vector.shape_cast %47 : vector<1x8x8xf32> to vector<8x8xf32>
    %49 = vector.shape_cast %46 : vector<8x8xf32> to vector<1x8x8xf32>
    tpu.vector_store %arg5[%c1, %c0_18, %c0_19], %49 {strides = array<i32>} : memref<2x8x8xf32, #tpu.memory_space<vmem>>, vector<1x8x8xf32>,
    return
  }
  func.func @transform_0(%arg0: i32) -> (i32, i32) {
    %c0_i32 = arith.constant 0 : i32
    %c0_i32_0 = arith.constant 0 : i32
    return %arg0, %c0_i32 : i32, i32
  }
  func.func @transform_1(%arg0: i32) -> (i32, i32) {
    %c0_i32 = arith.constant 0 : i32
    %c0_i32_0 = arith.constant 0 : i32
    %c0_i32_1 = arith.constant 0 : i32
    return %c0_i32, %c0_i32_0 : i32, i32
  }
  func.func @transform_2(%arg0: i32) -> (i32, i32) {
    %c0_i32 = arith.constant 0 : i32
    %c0_i32_0 = arith.constant 0 : i32
    %c0_i32_1 = arith.constant 0 : i32
    return %c0_i32, %c0_i32_0 : i32, i32
  }
  func.func @transform_3(%arg0: i32) -> (i32, i32) {
    %c0_i32 = arith.constant 0 : i32
    %c0_i32_0 = arith.constant 0 : i32
    %c0_i32_1 = arith.constant 0 : i32
    return %c0_i32, %c0_i32_0 : i32, i32
  }
  func.func @transform_4(%arg0: i32) -> (i32, i32, i32) {
    %c0_i32 = arith.constant 0 : i32
    %c0_i32_0 = arith.constant 0 : i32
    %c0_i32_1 = arith.constant 0 : i32
    return %arg0, %c0_i32, %c0_i32_0 : i32, i32, i32
  }
}

</mosaic_0001>

<llo_original>
// kernel: tpu_custom_call.1
$region0: #{tpu_custom_call.1}
  #allocation0 [shape = 'u32[]', space=smem, size = 0x4, offset = 0x4, fixed_abs, tag = 'smem constant byte address 0x4 - core index']
  #allocation1 [shape = 'u32[144,128]{1,0:T(1,128)}', space=vmem, size = 0x12000, scoped, tag = 'internal scratch']
  %s0 = inlined_call_operand.hbm [shape: f32[16,64], index: 0, kind: input, shape index: {}]
  %s1 = inlined_call_operand.hbm [shape: f32[64,256], index: 1, kind: input, shape index: {}]
  %s2 = inlined_call_operand.hbm [shape: f32[8,8], index: 2, kind: input, shape index: {}]
  %s3 = inlined_call_operand.hbm [shape: f32[8,8], index: 3, kind: input, shape index: {}]
  %s4 = inlined_call_operand.hbm [shape: f32[2,8,8], index: 4, kind: output, shape index: {}]
  %s5 = sld [smem:[#allocation0]]
  $region42: #{tpu_custom_call.1} parent=0
    _
  %s7 = ssub.s32 1, %s5
  %s8 = scalar_select 0, %s7, %s5
  $region1: #{tpu_custom_call.1} parent=0
    #allocation2 [shape = 'u8[8192]{0}', space=vmem, size = 0x2000, scoped, tag = 'input window, operand 0, single buffered']
    #allocation3 [shape = 's32[1]{0}', space=sflag, size = 0x4, scoped, tag = 'scoped memory for tpu_custom_call.1']
    #allocation4 [shape = 's32[1]{0}', space=sflag, size = 0x4, scoped, tag = 'scoped memory for tpu_custom_call.1']
    #allocation5 [shape = 'u8[65536]{0}', space=vmem, size = 0x10000, scoped, tag = 'input window, operand 1, single buffered']
    #allocation6 [shape = 's32[1]{0}', space=sflag, size = 0x4, scoped, tag = 'scoped memory for tpu_custom_call.1']
    #allocation7 [shape = 'u8[4096]{0}', space=vmem, size = 0x1000, scoped, tag = 'input window, operand 2, single buffered']
    #allocation8 [shape = 'u8[4096]{0}', space=vmem, size = 0x1000, scoped, tag = 'input window, operand 3, single buffered']
    #allocation9 [shape = 's32[1]{0}', space=sflag, size = 0x4, scoped, tag = 'scoped memory for tpu_custom_call.1']
    #allocation10 [shape = 'u8[8192]{0}', space=vmem, size = 0x2000, scoped, tag = 'output window, operand 0, single buffered']
    %9 = vsyncpa [#allocation3], 0
    %10 = vsyncpa [#allocation6], 0
    %11 = vsyncpa [#allocation9], 0
    %12 = vsyncpa [#allocation4], 0
    // Predicated region
    $region2: #{tpu_custom_call.1} parent=1 // pred_check
      _
    $region3: #{tpu_custom_call.1} parent=1 // pred_check_branch
      %14 = sbr.rel (0) target = $region5
    $region4: #{tpu_custom_call.1} parent=1 // pred_region
      %s16 = ssub.s32 256, 256
      %17 = vsyncadd [#allocation3], %s16
      %s18 = sshll.u32 [#allocation2], 4
      %s19 = int_to_ptr.vmem [resolvable:$true] %s18
      %24 = dma.hbm_to_vmem [thread:$0]  %s0, 256, %s19, [#allocation3], 128, 128, 8
    $region5: #{tpu_custom_call.1} parent=1 // pred_fallthru
      _
    // Predicated region
    $region6: #{tpu_custom_call.1} parent=1 // pred_check
      _
    $region7: #{tpu_custom_call.1} parent=1 // pred_check_branch
      %26 = sbr.rel (0) target = $region9
    $region8: #{tpu_custom_call.1} parent=1 // pred_region
      %s28 = ssub.s32 2048, 2048
      %29 = vsyncadd [#allocation6], %s28
      %s30 = sshll.u32 [#allocation5], 4
      %s31 = int_to_ptr.vmem [resolvable:$true] %s30
      %36 = dma.hbm_to_vmem [thread:$0]  %s1, 2048, %s31, [#allocation6], 256, 256, 16
    $region9: #{tpu_custom_call.1} parent=1 // pred_fallthru
      _
    // Predicated region
    $region10: #{tpu_custom_call.1} parent=1 // pred_check
      _
    $region11: #{tpu_custom_call.1} parent=1 // pred_check_branch
      %38 = sbr.rel (0) target = $region13
    $region12: #{tpu_custom_call.1} parent=1 // pred_region
      %s40 = ssub.s32 128, 128
      %41 = vsyncadd [#allocation6], %s40
      %s43 = sshll.u32 [#allocation7], 4
      %s44 = int_to_ptr.vmem [resolvable:$true] %s43
      %46 = dma.hbm_to_vmem [thread:$0]  %s2, 128, %s44, [#allocation6]
    $region13: #{tpu_custom_call.1} parent=1 // pred_fallthru
      _
    // Predicated region
    $region14: #{tpu_custom_call.1} parent=1 // pred_check
      _
    $region15: #{tpu_custom_call.1} parent=1 // pred_check_branch
      %48 = sbr.rel (0) target = $region17
    $region16: #{tpu_custom_call.1} parent=1 // pred_region
      %s50 = ssub.s32 128, 128
      %51 = vsyncadd [#allocation9], %s50
      %s53 = sshll.u32 [#allocation8], 4
      %s54 = int_to_ptr.vmem [resolvable:$true] %s53
      %56 = dma.hbm_to_vmem [thread:$0]  %s3, 128, %s54, [#allocation9]
    $region17: #{tpu_custom_call.1} parent=1 // pred_fallthru
      _
    // Predicated region
    $region18: #{tpu_custom_call.1} parent=1 // pred_check
      _
    $region19: #{tpu_custom_call.1} parent=1 // pred_check_branch
      %58 = sbr.rel (0) target = $region21
    $region20: #{tpu_custom_call.1} parent=1 // pred_region
      %59 = dma.done [#allocation3], 256
    $region21: #{tpu_custom_call.1} parent=1 // pred_fallthru
      _
    // Predicated region
    $region22: #{tpu_custom_call.1} parent=1 // pred_check
      _
    $region23: #{tpu_custom_call.1} parent=1 // pred_check_branch
      %61 = sbr.rel (0) target = $region25
    $region24: #{tpu_custom_call.1} parent=1 // pred_region
      %62 = dma.done [#allocation6], 2048
    $region25: #{tpu_custom_call.1} parent=1 // pred_fallthru
      _
    // Predicated region
    $region26: #{tpu_custom_call.1} parent=1 // pred_check
      _
    $region27: #{tpu_custom_call.1} parent=1 // pred_check_branch
      %64 = sbr.rel (0) target = $region29
    $region28: #{tpu_custom_call.1} parent=1 // pred_region
      %65 = dma.done [#allocation6], 128
    $region29: #{tpu_custom_call.1} parent=1 // pred_fallthru
      _
    // Predicated region
    $region30: #{tpu_custom_call.1} parent=1 // pred_check
      _
    $region31: #{tpu_custom_call.1} parent=1 // pred_check_branch
      %67 = sbr.rel (0) target = $region33
    $region32: #{tpu_custom_call.1} parent=1 // pred_region
      %68 = dma.done [#allocation9], 128
    $region33: #{tpu_custom_call.1} parent=1 // pred_fallthru
      _
    %v69 = vld [vmem:[#allocation2] sm:$0xff]
    %v70 = vld [vmem:[#allocation2 + $0x8] sm:$0xff]
    %v71 = vld [vmem:[#allocation5] sm:$0xff]
    %v72 = vld [vmem:[#allocation5 + $0x8] sm:$0xff]
    %v73 = vld [vmem:[#allocation5 + $0x10] sm:$0xff]
    %v74 = vld [vmem:[#allocation5 + $0x18] sm:$0xff]
    %v75 = vld [vmem:[#allocation5 + $0x20] sm:$0xff]
    %v76 = vld [vmem:[#allocation5 + $0x28] sm:$0xff]
    %v77 = vld [vmem:[#allocation5 + $0x30] sm:$0xff]
    %v78 = vld [vmem:[#allocation5 + $0x38] sm:$0xff]
    %v79 = vld [vmem:[#allocation5 + $0x40] sm:$0xff]
    %v80 = vld [vmem:[#allocation5 + $0x48] sm:$0xff]
    %v81 = vld [vmem:[#allocation5 + $0x50] sm:$0xff]
    %v82 = vld [vmem:[#allocation5 + $0x58] sm:$0xff]
    %v83 = vld [vmem:[#allocation5 + $0x60] sm:$0xff]
    %v84 = vld [vmem:[#allocation5 + $0x68] sm:$0xff]
    %v85 = vld [vmem:[#allocation5 + $0x70] sm:$0xff]
    %v86 = vld [vmem:[#allocation5 + $0x78] sm:$0xff]
    %vm87 = vcmask 523264
    %v89 = vsel %vm87, %v69, 0
    %v92 = vsel %vm87, %v70, 0
    %94 = vmatprep.subr.mxu0 0.0
    %95 = vmatpush1.msra.mxu0 0.0
    %96 = vmatprep.subr.mxu0 0.0
    %97 = vmatpush1.msra.mxu0 0.0
    %98 = vmatprep.subr.mxu0 0.0
    %99 = vmatpush1.msra.mxu0 0.0
    %100 = vmatprep.subr.mxu0 0.0
    %101 = vmatpush1.msra.mxu0 0.0
    %102 = vmatprep.subr.mxu0 0.0
    %103 = vmatpush1.msra.mxu0 0.0
    %104 = vmatprep.subr.mxu0 0.0
    %105 = vmatpush1.msra.mxu0 0.0
    %106 = vmatprep.subr.mxu0 0.0
    %107 = vmatpush1.msra.mxu0 0.0
    %108 = vmatprep.subr.mxu0 0.0
    %109 = vmatpush1.msra.mxu0 0.0
    %110 = vmatprep.subr.mxu0 %v86
    %111 = vmatpush1.msra.mxu0 %v85
    %112 = vmatprep.subr.mxu0 %v84
    %113 = vmatpush1.msra.mxu0 %v83
    %114 = vmatprep.subr.mxu0 %v82
    %115 = vmatpush1.msra.mxu0 %v81
    %116 = vmatprep.subr.mxu0 %v80
    %117 = vmatpush1.msra.mxu0 %v79
    %118 = vmatprep.subr.mxu0 %v78
    %119 = vmatpush1.msra.mxu0 %v77
    %120 = vmatprep.subr.mxu0 %v76
    %121 = vmatpush1.msra.mxu0 %v75
    %122 = vmatprep.subr.mxu0 %v74
    %123 = vmatpush1.msra.mxu0 %v73
    %124 = vmatprep.subr.mxu0 %v72
    %125 = vmatpush1.msra.mxu0 %v71
    %126 = vmatprep.subr.mxu0 0.0
    %127 = vmatpush2.msra.mxu0 0.0
    %128 = vmatprep.subr.mxu0 0.0
    %129 = vmatpush2.msra.mxu0 0.0
    %130 = vmatprep.subr.mxu0 0.0
    %131 = vmatpush2.msra.mxu0 0.0
    %132 = vmatprep.subr.mxu0 0.0
    %133 = vmatpush2.msra.mxu0 0.0
    %134 = vmatprep.subr.mxu0 0.0
    %135 = vmatpush2.msra.mxu0 0.0
    %136 = vmatprep.subr.mxu0 0.0
    %137 = vmatpush2.msra.mxu0 0.0
    %138 = vmatprep.subr.mxu0 0.0
    %139 = vmatpush2.msra.mxu0 0.0
    %140 = vmatprep.subr.mxu0 0.0
    %141 = vmatpush2.msra.mxu0 0.0
    %142 = vmatprep.subr.mxu0 0.0
    %143 = vmatpush2.msra.mxu0 0.0
    %144 = vmatprep.subr.mxu0 0.0
    %145 = vmatpush2.msra.mxu0 0.0
    %146 = vmatprep.subr.mxu0 0.0
    %147 = vmatpush2.msra.mxu0 0.0
    %148 = vmatprep.subr.mxu0 0.0
    %149 = vmatpush2.msra.mxu0 0.0
    %150 = vmatprep.subr.mxu0 0.0
    %151 = vmatpush2.msra.mxu0 0.0
    %152 = vmatprep.subr.mxu0 0.0
    %153 = vmatpush2.msra.mxu0 0.0
    %154 = vmatprep.subr.mxu0 0.0
    %155 = vmatpush2.msra.mxu0 0.0
    %156 = vmatprep.subr.mxu0 0.0
    %157 = vmatpush2.msra.mxu0 0.0
    %158 = vmatprep.mubr.f32.mxu0 0.0
    %159 = vmatmul.mubr.f32.gmra.mxu0 %v89
    %v160 = vpop.f32.mrf.mxu0
    %v161 = vadd.f32 0.0, %v160
    %v162 = vpop.f32.mrf.mxu0
    %v163 = vadd.f32 0.0, %v162
    %164 = vmatprep.mubr.f32.mxu0 0.0
    %165 = vmatmul.mubr.f32.gmra.mxu0 %v92
    %v166 = vpop.f32.mrf.mxu0
    %v167 = vadd.f32 0.0, %v166
    %v168 = vpop.f32.mrf.mxu0
    %v169 = vadd.f32 0.0, %v168
    %170 = vdwg.mxu0
    %v171 = vld [vmem:[#allocation7] sm:$0xff]
    %vm172 = vcmask 130048
    %v174 = vsel %vm172, %v163, 0
    %v177 = vsel %vm172, %v161, 0
    %179 = vmatprep.subr.mxu0 0.0
    %180 = vmatpush1.xpose.msra.mxu0 0.0
    %181 = vmatprep.subr.mxu0 0.0
    %182 = vmatpush1.xpose.msra.mxu0 0.0
    %183 = vmatprep.subr.mxu0 0.0
    %184 = vmatpush1.xpose.msra.mxu0 0.0
    %185 = vmatprep.subr.mxu0 0.0
    %186 = vmatpush1.xpose.msra.mxu0 0.0
    %187 = vmatprep.subr.mxu0 0.0
    %188 = vmatpush1.xpose.msra.mxu0 0.0
    %189 = vmatprep.subr.mxu0 0.0
    %190 = vmatpush1.xpose.msra.mxu0 0.0
    %191 = vmatprep.subr.mxu0 0.0
    %192 = vmatpush1.xpose.msra.mxu0 0.0
    %193 = vmatprep.subr.mxu0 0.0
    %194 = vmatpush1.xpose.msra.mxu0 0.0
    %195 = vmatprep.subr.mxu0 0.0
    %196 = vmatpush1.xpose.msra.mxu0 0.0
    %197 = vmatprep.subr.mxu0 0.0
    %198 = vmatpush1.xpose.msra.mxu0 0.0
    %199 = vmatprep.subr.mxu0 0.0
    %200 = vmatpush1.xpose.msra.mxu0 0.0
    %201 = vmatprep.subr.mxu0 0.0
    %202 = vmatpush1.xpose.msra.mxu0 0.0
    %203 = vmatprep.subr.mxu0 0.0
    %204 = vmatpush1.xpose.msra.mxu0 0.0
    %205 = vmatprep.subr.mxu0 0.0
    %206 = vmatpush1.xpose.msra.mxu0 0.0
    %207 = vmatprep.subr.mxu0 0.0
    %208 = vmatpush1.xpose.msra.mxu0 0.0
    %209 = vmatprep.subr.mxu0 0.0
    %210 = vmatpush1.xpose.msra.mxu0 %v177
    %211 = vmatprep.subr.mxu0 0.0
    %212 = vmatpush2.xpose.msra.mxu0 0.0
    %213 = vmatprep.subr.mxu0 0.0
    %214 = vmatpush2.xpose.msra.mxu0 0.0
    %215 = vmatprep.subr.mxu0 0.0
    %216 = vmatpush2.xpose.msra.mxu0 0.0
    %217 = vmatprep.subr.mxu0 0.0
    %218 = vmatpush2.xpose.msra.mxu0 0.0
    %219 = vmatprep.subr.mxu0 0.0
    %220 = vmatpush2.xpose.msra.mxu0 0.0
    %221 = vmatprep.subr.mxu0 0.0
    %222 = vmatpush2.xpose.msra.mxu0 0.0
    %223 = vmatprep.subr.mxu0 0.0
    %224 = vmatpush2.xpose.msra.mxu0 0.0
    %225 = vmatprep.subr.mxu0 0.0
    %226 = vmatpush2.xpose.msra.mxu0 0.0
    %227 = vmatprep.subr.mxu0 0.0
    %228 = vmatpush2.xpose.msra.mxu0 0.0
    %229 = vmatprep.subr.mxu0 0.0
    %230 = vmatpush2.xpose.msra.mxu0 0.0
    %231 = vmatprep.subr.mxu0 0.0
    %232 = vmatpush2.xpose.msra.mxu0 0.0
    %233 = vmatprep.subr.mxu0 0.0
    %234 = vmatpush2.xpose.msra.mxu0 0.0
    %235 = vmatprep.subr.mxu0 0.0
    %236 = vmatpush2.xpose.msra.mxu0 0.0
    %237 = vmatprep.subr.mxu0 0.0
    %238 = vmatpush2.xpose.msra.mxu0 0.0
    %239 = vmatprep.subr.mxu0 0.0
    %240 = vmatpush2.xpose.msra.mxu0 0.0
    %241 = vmatprep.subr.mxu0 0.0
    %242 = vmatpush2.xpose.msra.mxu0 0.0
    %243 = vmatprep.mubr.f32.mxu0 0.0
    %244 = vmatmul.mubr.f32.gmra.mxu0 %v174
    %v245 = vpop.f32.mrf.mxu0
    %v246 = vadd.f32 %v171, %v245
    %v247 = vpop.f32.mrf.mxu0
    %248 = vdwg.mxu0
    %v250 = vsel %vm172, %v169, 0
    %v253 = vsel %vm172, %v167, 0
    %255 = vmatprep.subr.mxu0 0.0
    %256 = vmatpush1.xpose.msra.mxu0 0.0
    %257 = vmatprep.subr.mxu0 0.0
    %258 = vmatpush1.xpose.msra.mxu0 0.0
    %259 = vmatprep.subr.mxu0 0.0
    %260 = vmatpush1.xpose.msra.mxu0 0.0
    %261 = vmatprep.subr.mxu0 0.0
    %262 = vmatpush1.xpose.msra.mxu0 0.0
    %263 = vmatprep.subr.mxu0 0.0
    %264 = vmatpush1.xpose.msra.mxu0 0.0
    %265 = vmatprep.subr.mxu0 0.0
    %266 = vmatpush1.xpose.msra.mxu0 0.0
    %267 = vmatprep.subr.mxu0 0.0
    %268 = vmatpush1.xpose.msra.mxu0 0.0
    %269 = vmatprep.subr.mxu0 0.0
    %270 = vmatpush1.xpose.msra.mxu0 0.0
    %271 = vmatprep.subr.mxu0 0.0
    %272 = vmatpush1.xpose.msra.mxu0 0.0
    %273 = vmatprep.subr.mxu0 0.0
    %274 = vmatpush1.xpose.msra.mxu0 0.0
    %275 = vmatprep.subr.mxu0 0.0
    %276 = vmatpush1.xpose.msra.mxu0 0.0
    %277 = vmatprep.subr.mxu0 0.0
    %278 = vmatpush1.xpose.msra.mxu0 0.0
    %279 = vmatprep.subr.mxu0 0.0
    %280 = vmatpush1.xpose.msra.mxu0 0.0
    %281 = vmatprep.subr.mxu0 0.0
    %282 = vmatpush1.xpose.msra.mxu0 0.0
    %283 = vmatprep.subr.mxu0 0.0
    %284 = vmatpush1.xpose.msra.mxu0 0.0
    %285 = vmatprep.subr.mxu0 0.0
    %286 = vmatpush1.xpose.msra.mxu0 %v253
    %287 = vmatprep.subr.mxu0 0.0
    %288 = vmatpush2.xpose.msra.mxu0 0.0
    %289 = vmatprep.subr.mxu0 0.0
    %290 = vmatpush2.xpose.msra.mxu0 0.0
    %291 = vmatprep.subr.mxu0 0.0
    %292 = vmatpush2.xpose.msra.mxu0 0.0
    %293 = vmatprep.subr.mxu0 0.0
    %294 = vmatpush2.xpose.msra.mxu0 0.0
    %295 = vmatprep.subr.mxu0 0.0
    %296 = vmatpush2.xpose.msra.mxu0 0.0
    %297 = vmatprep.subr.mxu0 0.0
    %298 = vmatpush2.xpose.msra.mxu0 0.0
    %299 = vmatprep.subr.mxu0 0.0
    %300 = vmatpush2.xpose.msra.mxu0 0.0
    %301 = vmatprep.subr.mxu0 0.0
    %302 = vmatpush2.xpose.msra.mxu0 0.0
    %303 = vmatprep.subr.mxu0 0.0
    %304 = vmatpush2.xpose.msra.mxu0 0.0
    %305 = vmatprep.subr.mxu0 0.0
    %306 = vmatpush2.xpose.msra.mxu0 0.0
    %307 = vmatprep.subr.mxu0 0.0
    %308 = vmatpush2.xpose.msra.mxu0 0.0
    %309 = vmatprep.subr.mxu0 0.0
    %310 = vmatpush2.xpose.msra.mxu0 0.0
    %311 = vmatprep.subr.mxu0 0.0
    %312 = vmatpush2.xpose.msra.mxu0 0.0
    %313 = vmatprep.subr.mxu0 0.0
    %314 = vmatpush2.xpose.msra.mxu0 0.0
    %315 = vmatprep.subr.mxu0 0.0
    %316 = vmatpush2.xpose.msra.mxu0 0.0
    %317 = vmatprep.subr.mxu0 0.0
    %318 = vmatpush2.xpose.msra.mxu0 0.0
    %319 = vmatprep.mubr.f32.mxu0 0.0
    %320 = vmatmul.mubr.f32.gmra.mxu0 %v250
    %v321 = vpop.f32.mrf.mxu0
    %v322 = vadd.f32 %v171, %v321
    %v323 = vpop.f32.mrf.mxu0
    %324 = vdwg.mxu0
    %v325 = vxor.u32 %v246, 2147483648
    %v326 = vxor.u32 %v322, 2147483648
    %v327 = vmul.f32 %v325, 1.442695
    %v328 = vpow.pop %v327
    %v329 = vmul.f32 %v326, 1.442695
    %v330 = vpow.pop %v329
    %v331 = vadd.f32 %v328, 1.0
    %v332 = vadd.f32 %v330, 1.0
    %v333 = vrcp.pop %v331
    %v334 = vmul.f32 1.0, %v333
    %v335 = vrcp.pop %v332
    %v336 = vmul.f32 1.0, %v335
    %v337 = vld [vmem:[#allocation8] sm:$0xff]
    %vm338 = vcmask 64512
    %v340 = vsel %vm338, %v337, 0
    %342 = vmatprep.subr.mxu0 0.0
    %343 = vmatpush1.msra.mxu0 0.0
    %344 = vmatprep.subr.mxu0 0.0
    %345 = vmatpush1.msra.mxu0 0.0
    %346 = vmatprep.subr.mxu0 0.0
    %347 = vmatpush1.msra.mxu0 0.0
    %348 = vmatprep.subr.mxu0 0.0
    %349 = vmatpush1.msra.mxu0 0.0
    %350 = vmatprep.subr.mxu0 0.0
    %351 = vmatpush1.msra.mxu0 0.0
    %352 = vmatprep.subr.mxu0 0.0
    %353 = vmatpush1.msra.mxu0 0.0
    %354 = vmatprep.subr.mxu0 0.0
    %355 = vmatpush1.msra.mxu0 0.0
    %356 = vmatprep.subr.mxu0 0.0
    %357 = vmatpush1.msra.mxu0 0.0
    %358 = vmatprep.subr.mxu0 0.0
    %359 = vmatpush1.msra.mxu0 0.0
    %360 = vmatprep.subr.mxu0 0.0
    %361 = vmatpush1.msra.mxu0 0.0
    %362 = vmatprep.subr.mxu0 0.0
    %363 = vmatpush1.msra.mxu0 0.0
    %364 = vmatprep.subr.mxu0 0.0
    %365 = vmatpush1.msra.mxu0 0.0
    %366 = vmatprep.subr.mxu0 0.0
    %367 = vmatpush1.msra.mxu0 0.0
    %368 = vmatprep.subr.mxu0 0.0
    %369 = vmatpush1.msra.mxu0 0.0
    %370 = vmatprep.subr.mxu0 0.0
    %371 = vmatpush1.msra.mxu0 0.0
    %372 = vmatprep.subr.mxu0 0.0
    %373 = vmatpush1.msra.mxu0 %v334
    %374 = vmatprep.subr.mxu0 0.0
    %375 = vmatpush2.msra.mxu0 0.0
    %376 = vmatprep.subr.mxu0 0.0
    %377 = vmatpush2.msra.mxu0 0.0
    %378 = vmatprep.subr.mxu0 0.0
    %379 = vmatpush2.msra.mxu0 0.0
    %380 = vmatprep.subr.mxu0 0.0
    %381 = vmatpush2.msra.mxu0 0.0
    %382 = vmatprep.subr.mxu0 0.0
    %383 = vmatpush2.msra.mxu0 0.0
    %384 = vmatprep.subr.mxu0 0.0
    %385 = vmatpush2.msra.mxu0 0.0
    %386 = vmatprep.subr.mxu0 0.0
    %387 = vmatpush2.msra.mxu0 0.0
    %388 = vmatprep.subr.mxu0 0.0
    %389 = vmatpush2.msra.mxu0 0.0
    %390 = vmatprep.subr.mxu0 0.0
    %391 = vmatpush2.msra.mxu0 0.0
    %392 = vmatprep.subr.mxu0 0.0
    %393 = vmatpush2.msra.mxu0 0.0
    %394 = vmatprep.subr.mxu0 0.0
    %395 = vmatpush2.msra.mxu0 0.0
    %396 = vmatprep.subr.mxu0 0.0
    %397 = vmatpush2.msra.mxu0 0.0
    %398 = vmatprep.subr.mxu0 0.0
    %399 = vmatpush2.msra.mxu0 0.0
    %400 = vmatprep.subr.mxu0 0.0
    %401 = vmatpush2.msra.mxu0 0.0
    %402 = vmatprep.subr.mxu0 0.0
    %403 = vmatpush2.msra.mxu0 0.0
    %404 = vmatprep.subr.mxu0 0.0
    %405 = vmatpush2.msra.mxu0 0.0
    %406 = vmatprep.mubr.f32.mxu0 0.0
    %407 = vmatmul.mubr.f32.gmra.mxu0 %v340
    %v408 = vpop.f32.mrf.mxu0
    %v409 = vadd.f32 0.0, %v408
    %v410 = vpop.f32.mrf.mxu0
    %411 = vdwg.mxu0
    %v412 = vsel %vm338, %v409, -inf
    %413 = vmax.xlane.f32.xlu0 %v412
    %v414 = vpop.xlane.xlu0 %413
    %v415 = vsub.f32 %v409, %v414
    %v416 = vmul.f32 %v415, 1.442695
    %v417 = vpow.pop %v416
    %v418 = vsel %vm338, %v417, 0.0
    %419 = vadd.xlane.f32.xlu0 %v418
    %v420 = vpop.xlane.xlu0 %419
    %v421 = vrcp.pop %v420
    %v422 = vmul.f32 %v417, %v421
    %423 = vst.msk [vmem:[#allocation10] sm:$0xff] %vm338, %v422
    %424 = vmatprep.subr.mxu0 0.0
    %425 = vmatpush1.msra.mxu0 0.0
    %426 = vmatprep.subr.mxu0 0.0
    %427 = vmatpush1.msra.mxu0 0.0
    %428 = vmatprep.subr.mxu0 0.0
    %429 = vmatpush1.msra.mxu0 0.0
    %430 = vmatprep.subr.mxu0 0.0
    %431 = vmatpush1.msra.mxu0 0.0
    %432 = vmatprep.subr.mxu0 0.0
    %433 = vmatpush1.msra.mxu0 0.0
    %434 = vmatprep.subr.mxu0 0.0
    %435 = vmatpush1.msra.mxu0 0.0
    %436 = vmatprep.subr.mxu0 0.0
    %437 = vmatpush1.msra.mxu0 0.0
    %438 = vmatprep.subr.mxu0 0.0
    %439 = vmatpush1.msra.mxu0 0.0
    %440 = vmatprep.subr.mxu0 0.0
    %441 = vmatpush1.msra.mxu0 0.0
    %442 = vmatprep.subr.mxu0 0.0
    %443 = vmatpush1.msra.mxu0 0.0
    %444 = vmatprep.subr.mxu0 0.0
    %445 = vmatpush1.msra.mxu0 0.0
    %446 = vmatprep.subr.mxu0 0.0
    %447 = vmatpush1.msra.mxu0 0.0
    %448 = vmatprep.subr.mxu0 0.0
    %449 = vmatpush1.msra.mxu0 0.0
    %450 = vmatprep.subr.mxu0 0.0
    %451 = vmatpush1.msra.mxu0 0.0
    %452 = vmatprep.subr.mxu0 0.0
    %453 = vmatpush1.msra.mxu0 0.0
    %454 = vmatprep.subr.mxu0 0.0
    %455 = vmatpush1.msra.mxu0 %v336
    %456 = vmatprep.subr.mxu0 0.0
    %457 = vmatpush2.msra.mxu0 0.0
    %458 = vmatprep.subr.mxu0 0.0
    %459 = vmatpush2.msra.mxu0 0.0
    %460 = vmatprep.subr.mxu0 0.0
    %461 = vmatpush2.msra.mxu0 0.0
    %462 = vmatprep.subr.mxu0 0.0
    %463 = vmatpush2.msra.mxu0 0.0
    %464 = vmatprep.subr.mxu0 0.0
    %465 = vmatpush2.msra.mxu0 0.0
    %466 = vmatprep.subr.mxu0 0.0
    %467 = vmatpush2.msra.mxu0 0.0
    %468 = vmatprep.subr.mxu0 0.0
    %469 = vmatpush2.msra.mxu0 0.0
    %470 = vmatprep.subr.mxu0 0.0
    %471 = vmatpush2.msra.mxu0 0.0
    %472 = vmatprep.subr.mxu0 0.0
    %473 = vmatpush2.msra.mxu0 0.0
    %474 = vmatprep.subr.mxu0 0.0
    %475 = vmatpush2.msra.mxu0 0.0
    %476 = vmatprep.subr.mxu0 0.0
    %477 = vmatpush2.msra.mxu0 0.0
    %478 = vmatprep.subr.mxu0 0.0
    %479 = vmatpush2.msra.mxu0 0.0
    %480 = vmatprep.subr.mxu0 0.0
    %481 = vmatpush2.msra.mxu0 0.0
    %482 = vmatprep.subr.mxu0 0.0
    %483 = vmatpush2.msra.mxu0 0.0
    %484 = vmatprep.subr.mxu0 0.0
    %485 = vmatpush2.msra.mxu0 0.0
    %486 = vmatprep.subr.mxu0 0.0
    %487 = vmatpush2.msra.mxu0 0.0
    %488 = vmatprep.mubr.f32.mxu0 0.0
    %489 = vmatmul.mubr.f32.gmra.mxu0 %v340
    %v490 = vpop.f32.mrf.mxu0
    %v491 = vadd.f32 0.0, %v490
    %v492 = vpop.f32.mrf.mxu0
    %493 = vdwg.mxu0
    %v494 = vsel %vm338, %v491, -inf
    %495 = vmax.xlane.f32.xlu0 %v494
    %v496 = vpop.xlane.xlu0 %495
    %v497 = vsub.f32 %v491, %v496
    %v498 = vmul.f32 %v497, 1.442695
    %v499 = vpow.pop %v498
    %v500 = vsel %vm338, %v499, 0.0
    %501 = vadd.xlane.f32.xlu0 %v500
    %v502 = vpop.xlane.xlu0 %501
    %v503 = vrcp.pop %v502
    %v504 = vmul.f32 %v499, %v503
    %s505 = scalar_lea.vmem [#allocation10], 8
    %506 = vst.msk [vmem:[%s505] sm:$0xff] %vm338, %v504
    // Predicated region
    $region34: #{tpu_custom_call.1} parent=1 // pred_check
      _
    $region35: #{tpu_custom_call.1} parent=1 // pred_check_branch
      %508 = sbr.rel (0) target = $region37
    $region36: #{tpu_custom_call.1} parent=1 // pred_region
      %s510 = ssub.s32 256, 256
      %511 = vsyncadd [#allocation4], %s510
      %s512 = sshll.u32 [#allocation10], 4
      %s513 = int_to_ptr.vmem [resolvable:$true] %s512
      %518 = dma.vmem_to_hbm [thread:$0]  %s513, 256, %s4, [#allocation4], 128, 128, 8
    $region37: #{tpu_custom_call.1} parent=1 // pred_fallthru
      _
    // Predicated region
    $region38: #{tpu_custom_call.1} parent=1 // pred_check
      _
    $region39: #{tpu_custom_call.1} parent=1 // pred_check_branch
      %520 = sbr.rel (0) target = $region41
    $region40: #{tpu_custom_call.1} parent=1 // pred_region
      %521 = dma.done [#allocation4], 256
    $region41: #{tpu_custom_call.1} parent=1 // pred_fallthru
      _
    %522 = vsyncpa [#allocation3], 1
    %523 = vsyncpa [#allocation6], 1
    %524 = vsyncpa [#allocation9], 1
    %525 = vsyncpa [#allocation4], 1

</llo_original>
